<compile_context>
chip_gen: v6e
topology: v6e:2x2x1
jax: 0.10.0
libtpu: 0.0.40
codegen_flags: <defaults>
</compile_context>

<pallas_src>
import functools

import jax
import jax.numpy as jnp
from jax.experimental import pallas as pl
from jax.experimental.pallas import tpu as pltpu

LANE = 128      # vreg lane width
SUBLANE = 8     # f32 sublane count


def _round_up(x, m):
    return (x + m - 1) // m * m


def mlp_kernel(x_ref,
               w_in_ref, b_in_ref,
               w1_ref, b1_ref,
               w2_ref, b2_ref,
               w3_ref, b3_ref,
               w4_ref, b4_ref,
               w_out_ref, b_out_ref,
               o_ref):
    """One batch tile of the fused MLP.

    Matches PyTorch model_structure.forward exactly:
      InputLayer (no activation), 4x (Linear + ReLU), OutputLayer (no activation).
    MXU matmuls accumulate in f32; bias-add / ReLU run in f32 on the VPU; activations
    are cast to the weight dtype (f32 or bf16) only as MXU inputs. The x cast lives
    in-kernel so the wrapper never does a separate HBM cast pass.
    """
    cdt = w_in_ref.dtype                    # compute dtype for MXU operands
    x = x_ref[...].astype(cdt)              # in-kernel cast, hidden under the DMA pipeline

    # InputLayer: Linear, NO ReLU.
    h = jnp.dot(x, w_in_ref[...], preferred_element_type=jnp.float32) + b_in_ref[...]
    h = h.astype(cdt)

    # HiddenLayer: 4x (Linear + ReLU). Python loop unrolls at trace time.
    for w_ref, b_ref in ((w1_ref, b1_ref), (w2_ref, b2_ref),
                         (w3_ref, b3_ref), (w4_ref, b4_ref)):
        a = jnp.dot(h, w_ref[...], preferred_element_type=jnp.float32) + b_ref[...]
        h = jnp.maximum(a, 0.0).astype(cdt)

    # OutputLayer: Linear, true (narrow) output width, no activation.
    o_ref[...] = (jnp.dot(h, w_out_ref[...], preferred_element_type=jnp.float32)
                  + b_out_ref[...]).astype(o_ref.dtype)


def init_linear_params(key, in_features, out_features, dtype=jnp.float32):
    """Deterministic init mimicking torch.nn.Linear default (uniform +/- 1/sqrt(in)).
    W is kept in the PyTorch (out, in) layout; prepare_params() transposes it once."""
    kw, kb = jax.random.split(key)
    bound = 1.0 / jnp.sqrt(jnp.float32(in_features))
    w = jax.random.uniform(kw, (out_features, in_features), dtype, -bound, bound)
    b = jax.random.uniform(kb, (out_features,), dtype, -bound, bound)
    return w, b


def prepare_params(torch_params, compute_dtype=jnp.float32):
    """One-time (hoisted out of the hot path) parameter preprocessing.

    - W: (out, in) -> (in, out) so the kernel computes y = x @ W + b directly.
    - b: (out,) -> (1, out) for 2-D broadcasting; kept in f32 (VPU math stays f32).
    - Hidden feature dims are zero-padded up to a multiple of 128 lanes so every
      intermediate matmul/vreg is lane-dense; the first layer's input dim stays at the
      true input_size (matches the streaming x), and the last layer's output dim stays
      at its true width (narrow lane-masked store, writeback = real bytes only).
      Zero padding is exact through bias-add and ReLU.
    - Weights optionally cast to bf16 (valid on v5e/v6e/v7x MXUs); biases stay f32.
    Returns (flat_param_tuple, true_out_features).
    """
    n = len(torch_params)
    out_features = int(torch_params[-1][0].shape[0])
    flat = []
    prev_out_pad = None
    for idx, (w, b) in enumerate(torch_params):
        w = jnp.asarray(w, jnp.float32).T            # (in, out)
        b = jnp.asarray(b, jnp.float32)[None, :]     # (1, out)
        d_in, d_out = int(w.shape[0]), int(w.shape[1])
        in_pad = d_in if idx == 0 else prev_out_pad
        out_pad = d_out if idx == n - 1 else _round_up(d_out, LANE)
        w = jnp.pad(w, ((0, in_pad - d_in), (0, out_pad - d_out)))
        b = jnp.pad(b, ((0, 0), (0, out_pad - d_out)))
        prev_out_pad = out_pad
        flat.append(w.astype(compute_dtype))
        flat.append(b)                               # biases stay f32
    return tuple(flat), out_features


def _choose_batch_tiling(batch, tile_batch):
    """Balanced batch tiling.

    - At least 2 grid steps whenever batch allows, so dimension_semantics=("parallel",)
      can shard tiles across the 2 TensorCores on v7x (harmless extra step on v5e/v6e).
    - tb = round_up(cdiv(batch, n_steps), 8): padding waste stays under one sublane
      group of one tile instead of up to (tile_batch - 1) rows.
    """
    min_steps = 2 if batch >= 2 * SUBLANE else 1
    n_steps = max(pl.cdiv(batch, tile_batch), min_steps)
    tb = _round_up(pl.cdiv(batch, n_steps), SUBLANE)
    n_steps = pl.cdiv(batch, tb)
    batch_padded = n_steps * tb
    return tb, n_steps, batch_padded


@functools.partial(jax.jit, static_argnames=("tile_batch",))
def model_structure_forward(x, flat_params, *, tile_batch=2048):
    """Runs the whole MLP as a single batch-tiled, software-pipelined Pallas kernel.

    x: (batch, input_size) float32
    flat_params: output of prepare_params()
    """
    batch, in_features = x.shape
    out_features = int(flat_params[-2].shape[1])      # true output width (e.g. 3)

    tb, n_steps, batch_padded = _choose_batch_tiling(batch, int(tile_batch))

    xc = x
    if batch_padded != batch:
        xc = jnp.pad(xc, ((0, batch_padded - batch), (0, 0)))

    grid = (n_steps,)

    # x / out blocks stream over the batch; weights & biases use constant block
    # indices so they are DMA'd once and stay resident in VMEM across grid steps.
    x_spec = pl.BlockSpec((tb, in_features), lambda i: (i, 0))
    out_spec = pl.BlockSpec((tb, out_features), lambda i: (i, 0))
    param_specs = [pl.BlockSpec(p.shape, lambda i: (0, 0)) for p in flat_params]

    # Advisory cost estimate for the XLA scheduler.
    flops = 0
    bytes_accessed = xc.size * xc.dtype.itemsize + batch_padded * out_features * 4
    for w in flat_params[0::2]:
        flops += 2 * batch_padded * int(w.shape[0]) * int(w.shape[1])
        bytes_accessed += w.size * w.dtype.itemsize
    for b in flat_params[1::2]:
        bytes_accessed += b.size * b.dtype.itemsize

    out_full = pl.pallas_call(
        mlp_kernel,
        out_shape=jax.ShapeDtypeStruct((batch_padded, out_features), jnp.float32),
        grid=grid,
        in_specs=[x_spec] + param_specs,
        out_specs=out_spec,
        compiler_params=pltpu.CompilerParams(
            dimension_semantics=("parallel",),   # shards batch tiles across TCs on v7x
        ),
        cost_estimate=pl.CostEstimate(flops=int(flops), transcendentals=0,
                                      bytes_accessed=int(bytes_accessed)),
    )(xc, *flat_params)

    if batch_padded != batch:
        out_full = out_full[:batch]
    return out_full


def ref_forward(x, params):
    """Plain-JAX reference (same math as the PyTorch module)."""
    h = x @ params[0][0].T + params[0][1]
    for (w, b) in params[1:5]:
        h = jnp.maximum(h @ w.T + b, 0.0)
    return h @ params[5][0].T + params[5][1]


if __name__ == "__main__":
    # Small shapes consistent with the module: input_size=16, hidden_size=32.
    input_size = 16
    hidden_size = 32

    root = jax.random.PRNGKey(0)
    keys = jax.random.split(root, 7)

    # Layer dims: in->h, h->2h, 2h->4h, 4h->2h, 2h->h, h->3
    dims = [
        (input_size, hidden_size),
        (hidden_size, 2 * hidden_size),
        (2 * hidden_size, 4 * hidden_size),
        (4 * hidden_size, 2 * hidden_size),
        (2 * hidden_size, hidden_size),
        (hidden_size, 3),
    ]
    params = [init_linear_params(k, di, do) for k, (di, do) in zip(keys[:6], dims)]

    # Ragged batch (37) exercises the balanced-tiling pad/slice path; the first 32 rows
    # are used for the divisible-batch path.
    x37 = jax.random.normal(keys[6], (37, input_size), jnp.float32)
    x32 = x37[:32]
    ref32 = ref_forward(x32, params)
    ref37 = ref_forward(x37, params)

    # f32 path, default tiling (2 balanced tiles of 16 rows -> exercises index_maps,
    # weight residency, the parallel grid axis).
    flat_f32, n_out = prepare_params(params, compute_dtype=jnp.float32)
    out_f32 = jax.block_until_ready(model_structure_forward(x32, flat_f32))
    assert out_f32.shape == (32, 3)
    assert jnp.allclose(out_f32, ref32, atol=1e-5, rtol=1e-5), "f32 mismatch vs reference"

    # f32 path, explicit small tile_batch -> 4-step grid.
    out_f32_small = jax.block_until_ready(
        model_structure_forward(x32, flat_f32, tile_batch=8))
    assert jnp.allclose(out_f32_small, ref32, atol=1e-5, rtol=1e-5), \
        "f32 (tile_batch=8) mismatch vs reference"

    # f32 path, non-divisible batch (37 -> two balanced tiles of 24, sliced back).
    out_f32_ragged = jax.block_until_ready(model_structure_forward(x37, flat_f32))
    assert out_f32_ragged.shape == (37, 3)
    assert jnp.allclose(out_f32_ragged, ref37, atol=1e-5, rtol=1e-5), \
        "f32 ragged-batch mismatch vs reference"

    # bf16 weights/activations (valid on v5e/v6e/v7x MXUs); f32 accumulation and f32
    # bias/ReLU math, so correctness holds with a looser tolerance.
    flat_bf16, _ = prepare_params(params, compute_dtype=jnp.bfloat16)
    out_bf16 = jax.block_until_ready(model_structure_forward(x32, flat_bf16))
    assert out_bf16.shape == (32, 3)
    assert jnp.allclose(out_bf16, ref32, atol=1e-1, rtol=1e-1), "bf16 mismatch vs reference"

    print("KERNEL_OK")
</pallas_src>

<mosaic_0001>
module attributes {stable_mosaic.version = 11 : i64} {
  func.func @mlp_kernel(%arg0: i32, %arg1: memref<16x16xf32, #tpu.memory_space<vmem>>, %arg2: memref<16x128xf32, #tpu.memory_space<vmem>>, %arg3: memref<1x128xf32, #tpu.memory_space<vmem>>, %arg4: memref<128x128xf32, #tpu.memory_space<vmem>>, %arg5: memref<1x128xf32, #tpu.memory_space<vmem>>, %arg6: memref<128x128xf32, #tpu.memory_space<vmem>>, %arg7: memref<1x128xf32, #tpu.memory_space<vmem>>, %arg8: memref<128x128xf32, #tpu.memory_space<vmem>>, %arg9: memref<1x128xf32, #tpu.memory_space<vmem>>, %arg10: memref<128x128xf32, #tpu.memory_space<vmem>>, %arg11: memref<1x128xf32, #tpu.memory_space<vmem>>, %arg12: memref<128x3xf32, #tpu.memory_space<vmem>>, %arg13: memref<1x3xf32, #tpu.memory_space<vmem>>, %arg14: memref<16x3xf32, #tpu.memory_space<vmem>>) attributes {dimension_semantics = [#tpu.dimension_semantics<parallel>], iteration_bounds = array<i64: 2>, scalar_prefetch = 0 : i64, scratch_operands = 0 : i64, tpu.core_type = #tpu.core_type<tc>, window_params = [{transform_indices = @transform_0, window_bounds = array<i64: 16, 16>}, {pipeline_mode = #tpu.pipeline_mode<synchronous>, transform_indices = @transform_1, window_bounds = array<i64: 16, 128>}, {pipeline_mode = #tpu.pipeline_mode<synchronous>, transform_indices = @transform_2, window_bounds = array<i64: 1, 128>}, {pipeline_mode = #tpu.pipeline_mode<synchronous>, transform_indices = @transform_3, window_bounds = array<i64: 128, 128>}, {pipeline_mode = #tpu.pipeline_mode<synchronous>, transform_indices = @transform_4, window_bounds = array<i64: 1, 128>}, {pipeline_mode = #tpu.pipeline_mode<synchronous>, transform_indices = @transform_5, window_bounds = array<i64: 128, 128>}, {pipeline_mode = #tpu.pipeline_mode<synchronous>, transform_indices = @transform_6, window_bounds = array<i64: 1, 128>}, {pipeline_mode = #tpu.pipeline_mode<synchronous>, transform_indices = @transform_7, window_bounds = array<i64: 128, 128>}, {pipeline_mode = #tpu.pipeline_mode<synchronous>, transform_indices = @transform_8, window_bounds = array<i64: 1, 128>}, {pipeline_mode = #tpu.pipeline_mode<synchronous>, transform_indices = @transform_9, window_bounds = array<i64: 128, 128>}, {pipeline_mode = #tpu.pipeline_mode<synchronous>, transform_indices = @transform_10, window_bounds = array<i64: 1, 128>}, {pipeline_mode = #tpu.pipeline_mode<synchronous>, transform_indices = @transform_11, window_bounds = array<i64: 128, 3>}, {pipeline_mode = #tpu.pipeline_mode<synchronous>, transform_indices = @transform_12, window_bounds = array<i64: 1, 3>}, {transform_indices = @transform_13, window_bounds = array<i64: 16, 3>}]} {
    %c0 = arith.constant 0 : index
    %c0_0 = arith.constant 0 : index
    %0 = vector.load %arg1[%c0, %c0_0] : memref<16x16xf32, #tpu.memory_space<vmem>>, vector<16x16xf32>
    %c0_1 = arith.constant 0 : index
    %c0_2 = arith.constant 0 : index
    %1 = vector.load %arg2[%c0_1, %c0_2] : memref<16x128xf32, #tpu.memory_space<vmem>>, vector<16x128xf32>
    %cst = arith.constant dense<0.000000e+00> : vector<16x128xf32>
    %2 = tpu.matmul %0, %1, %cst {dimension_numbers = #tpu.dot_dimension_numbers<[1], [0], [0], [1], [0, 0, 1, 1], [], []>} : vector<16x16xf32>, vector<16x128xf32>, vector<16x128xf32> -> vector<16x128xf32>
    %c0_3 = arith.constant 0 : index
    %c0_4 = arith.constant 0 : index
    %3 = vector.load %arg3[%c0_3, %c0_4] : memref<1x128xf32, #tpu.memory_space<vmem>>, vector<1x128xf32>
    %4 = vector.broadcast %3 : vector<1x128xf32> to vector<16x128xf32>
    %5 = arith.addf %2, %4 : vector<16x128xf32>
    %c0_5 = arith.constant 0 : index
    %c0_6 = arith.constant 0 : index
    %6 = vector.load %arg4[%c0_5, %c0_6] : memref<128x128xf32, #tpu.memory_space<vmem>>, vector<128x128xf32>
    %cst_7 = arith.constant dense<0.000000e+00> : vector<16x128xf32>
    %7 = tpu.matmul %5, %6, %cst_7 {dimension_numbers = #tpu.dot_dimension_numbers<[1], [0], [0], [1], [0, 0, 1, 1], [], []>} : vector<16x128xf32>, vector<128x128xf32>, vector<16x128xf32> -> vector<16x128xf32>
    %c0_8 = arith.constant 0 : index
    %c0_9 = arith.constant 0 : index
    %8 = vector.load %arg5[%c0_8, %c0_9] : memref<1x128xf32, #tpu.memory_space<vmem>>, vector<1x128xf32>
    %9 = vector.broadcast %8 : vector<1x128xf32> to vector<16x128xf32>
    %10 = arith.addf %7, %9 : vector<16x128xf32>
    %cst_10 = arith.constant 0.000000e+00 : f32
    %11 = vector.broadcast %cst_10 : f32 to vector<16x128xf32>
    %12 = arith.maximumf %10, %11 : vector<16x128xf32>
    %c0_11 = arith.constant 0 : index
    %c0_12 = arith.constant 0 : index
    %13 = vector.load %arg6[%c0_11, %c0_12] : memref<128x128xf32, #tpu.memory_space<vmem>>, vector<128x128xf32>
    %cst_13 = arith.constant dense<0.000000e+00> : vector<16x128xf32>
    %14 = tpu.matmul %12, %13, %cst_13 {dimension_numbers = #tpu.dot_dimension_numbers<[1], [0], [0], [1], [0, 0, 1, 1], [], []>} : vector<16x128xf32>, vector<128x128xf32>, vector<16x128xf32> -> vector<16x128xf32>
    %c0_14 = arith.constant 0 : index
    %c0_15 = arith.constant 0 : index
    %15 = vector.load %arg7[%c0_14, %c0_15] : memref<1x128xf32, #tpu.memory_space<vmem>>, vector<1x128xf32>
    %16 = vector.broadcast %15 : vector<1x128xf32> to vector<16x128xf32>
    %17 = arith.addf %14, %16 : vector<16x128xf32>
    %cst_16 = arith.constant 0.000000e+00 : f32
    %18 = vector.broadcast %cst_16 : f32 to vector<16x128xf32>
    %19 = arith.maximumf %17, %18 : vector<16x128xf32>
    %c0_17 = arith.constant 0 : index
    %c0_18 = arith.constant 0 : index
    %20 = vector.load %arg8[%c0_17, %c0_18] : memref<128x128xf32, #tpu.memory_space<vmem>>, vector<128x128xf32>
    %cst_19 = arith.constant dense<0.000000e+00> : vector<16x128xf32>
    %21 = tpu.matmul %19, %20, %cst_19 {dimension_numbers = #tpu.dot_dimension_numbers<[1], [0], [0], [1], [0, 0, 1, 1], [], []>} : vector<16x128xf32>, vector<128x128xf32>, vector<16x128xf32> -> vector<16x128xf32>
    %c0_20 = arith.constant 0 : index
    %c0_21 = arith.constant 0 : index
    %22 = vector.load %arg9[%c0_20, %c0_21] : memref<1x128xf32, #tpu.memory_space<vmem>>, vector<1x128xf32>
    %23 = vector.broadcast %22 : vector<1x128xf32> to vector<16x128xf32>
    %24 = arith.addf %21, %23 : vector<16x128xf32>
    %cst_22 = arith.constant 0.000000e+00 : f32
    %25 = vector.broadcast %cst_22 : f32 to vector<16x128xf32>
    %26 = arith.maximumf %24, %25 : vector<16x128xf32>
    %c0_23 = arith.constant 0 : index
    %c0_24 = arith.constant 0 : index
    %27 = vector.load %arg10[%c0_23, %c0_24] : memref<128x128xf32, #tpu.memory_space<vmem>>, vector<128x128xf32>
    %cst_25 = arith.constant dense<0.000000e+00> : vector<16x128xf32>
    %28 = tpu.matmul %26, %27, %cst_25 {dimension_numbers = #tpu.dot_dimension_numbers<[1], [0], [0], [1], [0, 0, 1, 1], [], []>} : vector<16x128xf32>, vector<128x128xf32>, vector<16x128xf32> -> vector<16x128xf32>
    %c0_26 = arith.constant 0 : index
    %c0_27 = arith.constant 0 : index
    %29 = vector.load %arg11[%c0_26, %c0_27] : memref<1x128xf32, #tpu.memory_space<vmem>>, vector<1x128xf32>
    %30 = vector.broadcast %29 : vector<1x128xf32> to vector<16x128xf32>
    %31 = arith.addf %28, %30 : vector<16x128xf32>
    %cst_28 = arith.constant 0.000000e+00 : f32
    %32 = vector.broadcast %cst_28 : f32 to vector<16x128xf32>
    %33 = arith.maximumf %31, %32 : vector<16x128xf32>
    %c0_29 = arith.constant 0 : index
    %c0_30 = arith.constant 0 : index
    %34 = vector.load %arg12[%c0_29, %c0_30] : memref<128x3xf32, #tpu.memory_space<vmem>>, vector<128x3xf32>
    %cst_31 = arith.constant dense<0.000000e+00> : vector<16x3xf32>
    %35 = tpu.matmul %33, %34, %cst_31 {dimension_numbers = #tpu.dot_dimension_numbers<[1], [0], [0], [1], [0, 0, 1, 1], [], []>} : vector<16x128xf32>, vector<128x3xf32>, vector<16x3xf32> -> vector<16x3xf32>
    %c0_32 = arith.constant 0 : index
    %c0_33 = arith.constant 0 : index
    %36 = vector.load %arg13[%c0_32, %c0_33] : memref<1x3xf32, #tpu.memory_space<vmem>>, vector<1x3xf32>
    %37 = vector.broadcast %36 : vector<1x3xf32> to vector<16x3xf32>
    %38 = arith.addf %35, %37 : vector<16x3xf32>
    %c0_34 = arith.constant 0 : index
    %c0_35 = arith.constant 0 : index
    %39 = vector.load %arg14[%c0_34, %c0_35] : memref<16x3xf32, #tpu.memory_space<vmem>>, vector<16x3xf32>
    tpu.vector_store %arg14[%c0_34, %c0_35], %38 {strides = array<i32>} : memref<16x3xf32, #tpu.memory_space<vmem>>, vector<16x3xf32>,
    return
  }
  func.func @transform_0(%arg0: i32) -> (i32, i32) {
    %c0_i32 = arith.constant 0 : i32
    %c0_i32_0 = arith.constant 0 : i32
    return %arg0, %c0_i32 : i32, i32
  }
  func.func @transform_1(%arg0: i32) -> (i32, i32) {
    %c0_i32 = arith.constant 0 : i32
    %c0_i32_0 = arith.constant 0 : i32
    %c0_i32_1 = arith.constant 0 : i32
    return %c0_i32, %c0_i32_0 : i32, i32
  }
  func.func @transform_2(%arg0: i32) -> (i32, i32) {
    %c0_i32 = arith.constant 0 : i32
    %c0_i32_0 = arith.constant 0 : i32
    %c0_i32_1 = arith.constant 0 : i32
    return %c0_i32, %c0_i32_0 : i32, i32
  }
  func.func @transform_3(%arg0: i32) -> (i32, i32) {
    %c0_i32 = arith.constant 0 : i32
    %c0_i32_0 = arith.constant 0 : i32
    %c0_i32_1 = arith.constant 0 : i32
    return %c0_i32, %c0_i32_0 : i32, i32
  }
  func.func @transform_4(%arg0: i32) -> (i32, i32) {
    %c0_i32 = arith.constant 0 : i32
    %c0_i32_0 = arith.constant 0 : i32
    %c0_i32_1 = arith.constant 0 : i32
    return %c0_i32, %c0_i32_0 : i32, i32
  }
  func.func @transform_5(%arg0: i32) -> (i32, i32) {
    %c0_i32 = arith.constant 0 : i32
    %c0_i32_0 = arith.constant 0 : i32
    %c0_i32_1 = arith.constant 0 : i32
    return %c0_i32, %c0_i32_0 : i32, i32
  }
  func.func @transform_6(%arg0: i32) -> (i32, i32) {
    %c0_i32 = arith.constant 0 : i32
    %c0_i32_0 = arith.constant 0 : i32
    %c0_i32_1 = arith.constant 0 : i32
    return %c0_i32, %c0_i32_0 : i32, i32
  }
  func.func @transform_7(%arg0: i32) -> (i32, i32) {
    %c0_i32 = arith.constant 0 : i32
    %c0_i32_0 = arith.constant 0 : i32
    %c0_i32_1 = arith.constant 0 : i32
    return %c0_i32, %c0_i32_0 : i32, i32
  }
  func.func @transform_8(%arg0: i32) -> (i32, i32) {
    %c0_i32 = arith.constant 0 : i32
    %c0_i32_0 = arith.constant 0 : i32
    %c0_i32_1 = arith.constant 0 : i32
    return %c0_i32, %c0_i32_0 : i32, i32
  }
  func.func @transform_9(%arg0: i32) -> (i32, i32) {
    %c0_i32 = arith.constant 0 : i32
    %c0_i32_0 = arith.constant 0 : i32
    %c0_i32_1 = arith.constant 0 : i32
    return %c0_i32, %c0_i32_0 : i32, i32
  }
  func.func @transform_10(%arg0: i32) -> (i32, i32) {
    %c0_i32 = arith.constant 0 : i32
    %c0_i32_0 = arith.constant 0 : i32
    %c0_i32_1 = arith.constant 0 : i32
    return %c0_i32, %c0_i32_0 : i32, i32
  }
  func.func @transform_11(%arg0: i32) -> (i32, i32) {
    %c0_i32 = arith.constant 0 : i32
    %c0_i32_0 = arith.constant 0 : i32
    %c0_i32_1 = arith.constant 0 : i32
    return %c0_i32, %c0_i32_0 : i32, i32
  }
  func.func @transform_12(%arg0: i32) -> (i32, i32) {
    %c0_i32 = arith.constant 0 : i32
    %c0_i32_0 = arith.constant 0 : i32
    %c0_i32_1 = arith.constant 0 : i32
    return %c0_i32, %c0_i32_0 : i32, i32
  }
  func.func @transform_13(%arg0: i32) -> (i32, i32) {
    %c0_i32 = arith.constant 0 : i32
    %c0_i32_0 = arith.constant 0 : i32
    return %arg0, %c0_i32 : i32, i32
  }
}

</mosaic_0001>

<llo_original>
// kernel: model_structure_forward.1
$region0: #{model_structure_forward.1}
  #allocation0 [shape = 'u32[]', space=smem, size = 0x4, offset = 0x4, fixed_abs, tag = 'smem constant byte address 0x4 - core index']
  #allocation1 [shape = 'u32[144,128]{1,0:T(1,128)}', space=vmem, size = 0x12000, scoped, tag = 'internal scratch']
  %s0 = inlined_call_operand.vmem [shape: f32[32,16], index: 0, kind: input, shape index: {}]
  %s1 = inlined_call_operand.vmem [shape: f32[16,128], index: 1, kind: input, shape index: {}]
  %s2 = inlined_call_operand.vmem [shape: f32[1,128], index: 2, kind: input, shape index: {}]
  %s3 = inlined_call_operand.vmem [shape: f32[128,128], index: 3, kind: input, shape index: {}]
  %s4 = inlined_call_operand.vmem [shape: f32[1,128], index: 4, kind: input, shape index: {}]
  %s5 = inlined_call_operand.hbm [shape: f32[128,128], index: 5, kind: input, shape index: {}]
  %s6 = inlined_call_operand.vmem [shape: f32[1,128], index: 6, kind: input, shape index: {}]
  %s7 = inlined_call_operand.hbm [shape: f32[128,128], index: 7, kind: input, shape index: {}]
  %s8 = inlined_call_operand.vmem [shape: f32[1,128], index: 8, kind: input, shape index: {}]
  %s9 = inlined_call_operand.hbm [shape: f32[128,128], index: 9, kind: input, shape index: {}]
  %s10 = inlined_call_operand.vmem [shape: f32[1,128], index: 10, kind: input, shape index: {}]
  %s11 = inlined_call_operand.vmem [shape: f32[128,3], index: 11, kind: input, shape index: {}]
  %s12 = inlined_call_operand.vmem [shape: f32[1,3], index: 12, kind: input, shape index: {}]
  %s13 = inlined_call_operand.vmem [shape: f32[32,3], index: 13, kind: output, shape index: {}]
  %s14 = sld [smem:[#allocation0]]
  $region97: #{model_structure_forward.1} parent=0
    _
  %s16 = ssub.s32 1, %s14
  %s17 = scalar_select 0, %s16, %s14
  $region1: #{model_structure_forward.1} parent=0
    #allocation2 [shape = 'u8[65536]{0}', space=vmem, size = 0x10000, scoped, tag = 'input window, operand 5, single buffered']
    #allocation3 [shape = 's32[2]{0}', space=sflag, size = 0x8, scoped, tag = 'scoped memory for model_structure_forward.1']
    #allocation4 [shape = 'u8[65536]{0}', space=vmem, size = 0x10000, scoped, tag = 'input window, operand 7, single buffered']
    #allocation5 [shape = 's32[1]{0}', space=sflag, size = 0x4, scoped, tag = 'scoped memory for model_structure_forward.1']
    #allocation6 [shape = 'u8[65536]{0}', space=vmem, size = 0x10000, scoped, tag = 'input window, operand 9, single buffered']
    %18 = vsyncpa [#allocation3], 0
    %19 = vsyncpa [#allocation5], 0
    loop: start=0, step=1, limit=4
    $region2: #{model_structure_forward.1} parent=1 // loop_pre_header
      _
    $region3: #{model_structure_forward.1} parent=1 // loop_header
      %s21 = sphi 0, %s25
      %p22 = scmp.ge.s32.totalorder %s21, 4
      %s31 = sphi 0, %s33
      %s34 = sphi 0, %s31
      %s35 = sphi 0, %s34
      %s51 = sphi 0, %s35
      %s55 = sphi 0, %s55
      %s57 = sphi 0, %s55
      %s58 = sphi 0, %s57
      %s72 = sphi 0, %s58
      %s76 = sphi 0, %s76
      %s78 = sphi 0, %s76
      %s79 = sphi 0, %s78
      %s93 = sphi 0, %s79
      %s97 = sphi 0, %s97
      %s99 = sphi 0, %s97
      %s100 = sphi 0, %s99
      %s114 = sphi 0, %s100
      %s118 = sphi 0, %s118
      %s120 = sphi 0, %s118
      %s121 = sphi 0, %s120
      %s135 = sphi 0, %s121
      %s139 = sphi 0, %s139
      %s141 = sphi 0, %s139
      %s142 = sphi 0, %s141
      %s156 = sphi 0, %s142
      %s160 = sphi 0, %s160
      %s162 = sphi 0, %s160
      %s163 = sphi 0, %s162
      %s177 = sphi 0, %s163
      %s181 = sphi 0, %s181
      %s183 = sphi 0, %s181
      %s184 = sphi 0, %s183
      %s198 = sphi 0, %s184
      %s202 = sphi 0, %s202
      %s204 = sphi 0, %s202
      %s205 = sphi 0, %s204
      %s219 = sphi 0, %s205
      %s223 = sphi 0, %s223
      %s225 = sphi 0, %s223
      %s226 = sphi 0, %s225
      %s240 = sphi 0, %s226
      %s244 = sphi 0, %s244
      %s246 = sphi 0, %s244
      %s247 = sphi 0, %s246
      %s261 = sphi 0, %s247
      %s265 = sphi 0, %s265
      %s267 = sphi 0, %s265
      %s268 = sphi 0, %s267
      %s282 = sphi 0, %s268
      %s286 = sphi 0, %s286
      %s288 = sphi 0, %s286
      %s289 = sphi 0, %s288
      %s303 = sphi 0, %s289
      %s309 = sphi 0, %s311
      %s312 = sphi 0, %s309
      %s313 = sphi 0, %s312
      %s329 = sphi 0, %s313
    $region4: #{model_structure_forward.1} parent=1 // loop_header_branch
      %24 = sbr.rel (%p22) target = $region8
    $region5: #{model_structure_forward.1} parent=1 // loop_body
      %s26 = ssub.s32 %s21, 1
      %s27 = ssub.s32 %s21, 2
      %s28 = sadd.s32 %s21, 1
      %s29 = ssub.s32 %s21, %s28
      %p30 = scmp.eq.s32.totalorder %s29, 0
      %s32 = sadd.s32 %s31, 1
      %s33 = scalar_select %p30, %s31, %s32
      %p36 = pneg %p30
      %p37 = scmp.eq.s32.totalorder %s21, 1
      %p38 = por %p36, %p37
      %p39 = scmp.ne.s32.totalorder %s31, %s34
      %p40 = scmp.eq.s32.totalorder %s21, 0
      %p41 = por %p39, %p40
      %p42 = scmp.ne.s32.totalorder %s31, %s34
      %p43 = scmp.eq.s32.totalorder %s26, 1
      %p44 = por %p42, %p43
      %p45 = scmp.ne.s32.totalorder %s34, %s35
      %p46 = scmp.eq.s32.totalorder %s26, 0
      %p47 = por %p45, %p46
      %p48 = scmp.ne.s32.totalorder %s34, %s35
      %p49 = scmp.eq.s32.totalorder %s27, 1
      %p50 = por %p48, %p49
      %p52 = scmp.ne.s32.totalorder %s35, %s51
      %p53 = scmp.eq.s32.totalorder %s27, 0
      %p54 = por %p52, %p53
      %s56 = sadd.s32 %s55, 1
      %p59 = scmp.eq.s32.totalorder %s21, 1
      %p60 = scmp.ne.s32.totalorder %s55, %s57
      %p61 = scmp.eq.s32.totalorder %s21, 0
      %p62 = por %p60, %p61
      %p63 = scmp.ne.s32.totalorder %s55, %s57
      %p64 = scmp.eq.s32.totalorder %s26, 1
      %p65 = por %p63, %p64
      %p66 = scmp.ne.s32.totalorder %s57, %s58
      %p67 = scmp.eq.s32.totalorder %s26, 0
      %p68 = por %p66, %p67
      %p69 = scmp.ne.s32.totalorder %s57, %s58
      %p70 = scmp.eq.s32.totalorder %s27, 1
      %p71 = por %p69, %p70
      %p73 = scmp.ne.s32.totalorder %s58, %s72
      %p74 = scmp.eq.s32.totalorder %s27, 0
      %p75 = por %p73, %p74
      %s77 = sadd.s32 %s76, 1
      %p80 = scmp.eq.s32.totalorder %s21, 1
      %p81 = scmp.ne.s32.totalorder %s76, %s78
      %p82 = scmp.eq.s32.totalorder %s21, 0
      %p83 = por %p81, %p82
      %p84 = scmp.ne.s32.totalorder %s76, %s78
      %p85 = scmp.eq.s32.totalorder %s26, 1
      %p86 = por %p84, %p85
      %p87 = scmp.ne.s32.totalorder %s78, %s79
      %p88 = scmp.eq.s32.totalorder %s26, 0
      %p89 = por %p87, %p88
      %p90 = scmp.ne.s32.totalorder %s78, %s79
      %p91 = scmp.eq.s32.totalorder %s27, 1
      %p92 = por %p90, %p91
      %p94 = scmp.ne.s32.totalorder %s79, %s93
      %p95 = scmp.eq.s32.totalorder %s27, 0
      %p96 = por %p94, %p95
      %s98 = sadd.s32 %s97, 1
      %p101 = scmp.eq.s32.totalorder %s21, 1
      %p102 = scmp.ne.s32.totalorder %s97, %s99
      %p103 = scmp.eq.s32.totalorder %s21, 0
      %p104 = por %p102, %p103
      %p105 = scmp.ne.s32.totalorder %s97, %s99
      %p106 = scmp.eq.s32.totalorder %s26, 1
      %p107 = por %p105, %p106
      %p108 = scmp.ne.s32.totalorder %s99, %s100
      %p109 = scmp.eq.s32.totalorder %s26, 0
      %p110 = por %p108, %p109
      %p111 = scmp.ne.s32.totalorder %s99, %s100
      %p112 = scmp.eq.s32.totalorder %s27, 1
      %p113 = por %p111, %p112
      %p115 = scmp.ne.s32.totalorder %s100, %s114
      %p116 = scmp.eq.s32.totalorder %s27, 0
      %p117 = por %p115, %p116
      %s119 = sadd.s32 %s118, 1
      %p122 = scmp.eq.s32.totalorder %s21, 1
      %p123 = scmp.ne.s32.totalorder %s118, %s120
      %p124 = scmp.eq.s32.totalorder %s21, 0
      %p125 = por %p123, %p124
      %p126 = scmp.ne.s32.totalorder %s118, %s120
      %p127 = scmp.eq.s32.totalorder %s26, 1
      %p128 = por %p126, %p127
      %p129 = scmp.ne.s32.totalorder %s120, %s121
      %p130 = scmp.eq.s32.totalorder %s26, 0
      %p131 = por %p129, %p130
      %p132 = scmp.ne.s32.totalorder %s120, %s121
      %p133 = scmp.eq.s32.totalorder %s27, 1
      %p134 = por %p132, %p133
      %p136 = scmp.ne.s32.totalorder %s121, %s135
      %p137 = scmp.eq.s32.totalorder %s27, 0
      %p138 = por %p136, %p137
      %s140 = sadd.s32 %s139, 1
      %p143 = scmp.eq.s32.totalorder %s21, 1
      %p144 = scmp.ne.s32.totalorder %s139, %s141
      %p145 = scmp.eq.s32.totalorder %s21, 0
      %p146 = por %p144, %p145
      %p147 = scmp.ne.s32.totalorder %s139, %s141
      %p148 = scmp.eq.s32.totalorder %s26, 1
      %p149 = por %p147, %p148
      %p150 = scmp.ne.s32.totalorder %s141, %s142
      %p151 = scmp.eq.s32.totalorder %s26, 0
      %p152 = por %p150, %p151
      %p153 = scmp.ne.s32.totalorder %s141, %s142
      %p154 = scmp.eq.s32.totalorder %s27, 1
      %p155 = por %p153, %p154
      %p157 = scmp.ne.s32.totalorder %s142, %s156
      %p158 = scmp.eq.s32.totalorder %s27, 0
      %p159 = por %p157, %p158
      %s161 = sadd.s32 %s160, 1
      %p164 = scmp.eq.s32.totalorder %s21, 1
      %p165 = scmp.ne.s32.totalorder %s160, %s162
      %p166 = scmp.eq.s32.totalorder %s21, 0
      %p167 = por %p165, %p166
      %p168 = scmp.ne.s32.totalorder %s160, %s162
      %p169 = scmp.eq.s32.totalorder %s26, 1
      %p170 = por %p168, %p169
      %p171 = scmp.ne.s32.totalorder %s162, %s163
      %p172 = scmp.eq.s32.totalorder %s26, 0
      %p173 = por %p171, %p172
      %p174 = scmp.ne.s32.totalorder %s162, %s163
      %p175 = scmp.eq.s32.totalorder %s27, 1
      %p176 = por %p174, %p175
      %p178 = scmp.ne.s32.totalorder %s163, %s177
      %p179 = scmp.eq.s32.totalorder %s27, 0
      %p180 = por %p178, %p179
      %s182 = sadd.s32 %s181, 1
      %p185 = scmp.eq.s32.totalorder %s21, 1
      %p186 = scmp.ne.s32.totalorder %s181, %s183
      %p187 = scmp.eq.s32.totalorder %s21, 0
      %p188 = por %p186, %p187
      %p189 = scmp.ne.s32.totalorder %s181, %s183
      %p190 = scmp.eq.s32.totalorder %s26, 1
      %p191 = por %p189, %p190
      %p192 = scmp.ne.s32.totalorder %s183, %s184
      %p193 = scmp.eq.s32.totalorder %s26, 0
      %p194 = por %p192, %p193
      %p195 = scmp.ne.s32.totalorder %s183, %s184
      %p196 = scmp.eq.s32.totalorder %s27, 1
      %p197 = por %p195, %p196
      %p199 = scmp.ne.s32.totalorder %s184, %s198
      %p200 = scmp.eq.s32.totalorder %s27, 0
      %p201 = por %p199, %p200
      %s203 = sadd.s32 %s202, 1
      %p206 = scmp.eq.s32.totalorder %s21, 1
      %p207 = scmp.ne.s32.totalorder %s202, %s204
      %p208 = scmp.eq.s32.totalorder %s21, 0
      %p209 = por %p207, %p208
      %p210 = scmp.ne.s32.totalorder %s202, %s204
      %p211 = scmp.eq.s32.totalorder %s26, 1
      %p212 = por %p210, %p211
      %p213 = scmp.ne.s32.totalorder %s204, %s205
      %p214 = scmp.eq.s32.totalorder %s26, 0
      %p215 = por %p213, %p214
      %p216 = scmp.ne.s32.totalorder %s204, %s205
      %p217 = scmp.eq.s32.totalorder %s27, 1
      %p218 = por %p216, %p217
      %p220 = scmp.ne.s32.totalorder %s205, %s219
      %p221 = scmp.eq.s32.totalorder %s27, 0
      %p222 = por %p220, %p221
      %s224 = sadd.s32 %s223, 1
      %p227 = scmp.eq.s32.totalorder %s21, 1
      %p228 = scmp.ne.s32.totalorder %s223, %s225
      %p229 = scmp.eq.s32.totalorder %s21, 0
      %p230 = por %p228, %p229
      %p231 = scmp.ne.s32.totalorder %s223, %s225
      %p232 = scmp.eq.s32.totalorder %s26, 1
      %p233 = por %p231, %p232
      %p234 = scmp.ne.s32.totalorder %s225, %s226
      %p235 = scmp.eq.s32.totalorder %s26, 0
      %p236 = por %p234, %p235
      %p237 = scmp.ne.s32.totalorder %s225, %s226
      %p238 = scmp.eq.s32.totalorder %s27, 1
      %p239 = por %p237, %p238
      %p241 = scmp.ne.s32.totalorder %s226, %s240
      %p242 = scmp.eq.s32.totalorder %s27, 0
      %p243 = por %p241, %p242
      %s245 = sadd.s32 %s244, 1
      %p248 = scmp.eq.s32.totalorder %s21, 1
      %p249 = scmp.ne.s32.totalorder %s244, %s246
      %p250 = scmp.eq.s32.totalorder %s21, 0
      %p251 = por %p249, %p250
      %p252 = scmp.ne.s32.totalorder %s244, %s246
      %p253 = scmp.eq.s32.totalorder %s26, 1
      %p254 = por %p252, %p253
      %p255 = scmp.ne.s32.totalorder %s246, %s247
      %p256 = scmp.eq.s32.totalorder %s26, 0
      %p257 = por %p255, %p256
      %p258 = scmp.ne.s32.totalorder %s246, %s247
      %p259 = scmp.eq.s32.totalorder %s27, 1
      %p260 = por %p258, %p259
      %p262 = scmp.ne.s32.totalorder %s247, %s261
      %p263 = scmp.eq.s32.totalorder %s27, 0
      %p264 = por %p262, %p263
      %s266 = sadd.s32 %s265, 1
      %p269 = scmp.eq.s32.totalorder %s21, 1
      %p270 = scmp.ne.s32.totalorder %s265, %s267
      %p271 = scmp.eq.s32.totalorder %s21, 0
      %p272 = por %p270, %p271
      %p273 = scmp.ne.s32.totalorder %s265, %s267
      %p274 = scmp.eq.s32.totalorder %s26, 1
      %p275 = por %p273, %p274
      %p276 = scmp.ne.s32.totalorder %s267, %s268
      %p277 = scmp.eq.s32.totalorder %s26, 0
      %p278 = por %p276, %p277
      %p279 = scmp.ne.s32.totalorder %s267, %s268
      %p280 = scmp.eq.s32.totalorder %s27, 1
      %p281 = por %p279, %p280
      %p283 = scmp.ne.s32.totalorder %s268, %s282
      %p284 = scmp.eq.s32.totalorder %s27, 0
      %p285 = por %p283, %p284
      %s287 = sadd.s32 %s286, 1
      %p290 = scmp.eq.s32.totalorder %s21, 1
      %p291 = scmp.ne.s32.totalorder %s286, %s288
      %p292 = scmp.eq.s32.totalorder %s21, 0
      %p293 = por %p291, %p292
      %p294 = scmp.ne.s32.totalorder %s286, %s288
      %p295 = scmp.eq.s32.totalorder %s26, 1
      %p296 = por %p294, %p295
      %p297 = scmp.ne.s32.totalorder %s288, %s289
      %p298 = scmp.eq.s32.totalorder %s26, 0
      %p299 = por %p297, %p298
      %p300 = scmp.ne.s32.totalorder %s288, %s289
      %p301 = scmp.eq.s32.totalorder %s27, 1
      %p302 = por %p300, %p301
      %p304 = scmp.ne.s32.totalorder %s289, %s303
      %p305 = scmp.eq.s32.totalorder %s27, 0
      %p306 = por %p304, %p305
      %s307 = ssub.s32 %s21, %s28
      %p308 = scmp.eq.s32.totalorder %s307, 0
      %s310 = sadd.s32 %s309, 1
      %s311 = scalar_select %p308, %s309, %s310
      %p314 = pneg %p308
      %p315 = scmp.eq.s32.totalorder %s21, 1
      %p316 = por %p314, %p315
      %p317 = scmp.ne.s32.totalorder %s309, %s312
      %p318 = scmp.eq.s32.totalorder %s21, 0
      %p319 = por %p317, %p318
      %p320 = scmp.ne.s32.totalorder %s309, %s312
      %p321 = scmp.eq.s32.totalorder %s26, 1
      %p322 = por %p320, %p321
      %p323 = scmp.ne.s32.totalorder %s312, %s313
      %p324 = scmp.eq.s32.totalorder %s26, 0
      %p325 = por %p323, %p324
      %p326 = scmp.ne.s32.totalorder %s312, %s313
      %p327 = scmp.eq.s32.totalorder %s27, 1
      %p328 = por %p326, %p327
      %p330 = scmp.ne.s32.totalorder %s313, %s329
      %p331 = scmp.eq.s32.totalorder %s27, 0
      %p332 = por %p330, %p331
      %p333 = scmp.le.s32.totalorder 1, %s21
      %p334 = scmp.lt.s32.totalorder %s21, 3
      %p335 = pnand %p333, %p334
      %p336 = pneg %p335
      // Predicated region
      $region9: #{model_structure_forward.1} parent=5 // pred_check
        _
      $region10: #{model_structure_forward.1} parent=5 // pred_check_branch
        %338 = sbr.rel (%p335) target = $region12
      $region11: #{model_structure_forward.1} parent=5 // pred_region
        %s339 = ssub.s32 %s21, 1
        // Predicated region
        $region13: #{model_structure_forward.1} parent=11 // pred_check
          %p340 = pneg %p68
        $region14: #{model_structure_forward.1} parent=11 // pred_check_branch
          %342 = sbr.rel (%p340) target = $region16
        $region15: #{model_structure_forward.1} parent=11 // pred_region
          _
        $region16: #{model_structure_forward.1} parent=11 // pred_fallthru
          _
        // Predicated region
        $region17: #{model_structure_forward.1} parent=11 // pred_check
          %p343 = pneg %p89
        $region18: #{model_structure_forward.1} parent=11 // pred_check_branch
          %345 = sbr.rel (%p343) target = $region20
        $region19: #{model_structure_forward.1} parent=11 // pred_region
          _
        $region20: #{model_structure_forward.1} parent=11 // pred_fallthru
          _
        // Predicated region
        $region21: #{model_structure_forward.1} parent=11 // pred_check
          %p346 = pneg %p110
        $region22: #{model_structure_forward.1} parent=11 // pred_check_branch
          %348 = sbr.rel (%p346) target = $region24
        $region23: #{model_structure_forward.1} parent=11 // pred_region
          _
        $region24: #{model_structure_forward.1} parent=11 // pred_fallthru
          _
        // Predicated region
        $region25: #{model_structure_forward.1} parent=11 // pred_check
          %p349 = pneg %p131
        $region26: #{model_structure_forward.1} parent=11 // pred_check_branch
          %351 = sbr.rel (%p349) target = $region28
        $region27: #{model_structure_forward.1} parent=11 // pred_region
          _
        $region28: #{model_structure_forward.1} parent=11 // pred_fallthru
          _
        // Predicated region
        $region29: #{model_structure_forward.1} parent=11 // pred_check
          %p352 = pneg %p152
        $region30: #{model_structure_forward.1} parent=11 // pred_check_branch
          %354 = sbr.rel (%p352) target = $region32
        $region31: #{model_structure_forward.1} parent=11 // pred_region
          %s356 = ssub.s32 2048, 2048
          %357 = vsyncadd [#allocation3], %s356
          %s358 = sshll.u32 [#allocation2], 4
          %s359 = int_to_ptr.vmem [resolvable:$true] %s358
          %364 = dma.hbm_to_vmem [thread:$0]  %s5, 2048, %s359, [#allocation3], 128, 128, 8
        $region32: #{model_structure_forward.1} parent=11 // pred_fallthru
          _
        // Predicated region
        $region33: #{model_structure_forward.1} parent=11 // pred_check
          %p365 = pneg %p173
        $region34: #{model_structure_forward.1} parent=11 // pred_check_branch
          %367 = sbr.rel (%p365) target = $region36
        $region35: #{model_structure_forward.1} parent=11 // pred_region
          _
        $region36: #{model_structure_forward.1} parent=11 // pred_fallthru
          _
        // Predicated region
        $region37: #{model_structure_forward.1} parent=11 // pred_check
          %p368 = pneg %p194
        $region38: #{model_structure_forward.1} parent=11 // pred_check_branch
          %370 = sbr.rel (%p368) target = $region40
        $region39: #{model_structure_forward.1} parent=11 // pred_region
          %s372 = ssub.s32 2048, 2048
          %373 = vsyncadd [#allocation5], %s372
          %s374 = sshll.u32 [#allocation4], 4
          %s375 = int_to_ptr.vmem [resolvable:$true] %s374
          %380 = dma.hbm_to_vmem [thread:$0]  %s7, 2048, %s375, [#allocation5], 128, 128, 8
        $region40: #{model_structure_forward.1} parent=11 // pred_fallthru
          _
        // Predicated region
        $region41: #{model_structure_forward.1} parent=11 // pred_check
          %p381 = pneg %p215
        $region42: #{model_structure_forward.1} parent=11 // pred_check_branch
          %383 = sbr.rel (%p381) target = $region44
        $region43: #{model_structure_forward.1} parent=11 // pred_region
          _
        $region44: #{model_structure_forward.1} parent=11 // pred_fallthru
          _
        // Predicated region
        $region45: #{model_structure_forward.1} parent=11 // pred_check
          %p384 = pneg %p236
        $region46: #{model_structure_forward.1} parent=11 // pred_check_branch
          %386 = sbr.rel (%p384) target = $region48
        $region47: #{model_structure_forward.1} parent=11 // pred_region
          %s388 = ssub.s32 2048, 2048
          %389 = vsyncadd [#allocation5], %s388
          %s390 = sshll.u32 [#allocation6], 4
          %s391 = int_to_ptr.vmem [resolvable:$true] %s390
          %396 = dma.hbm_to_vmem [thread:$0]  %s9, 2048, %s391, [#allocation5], 128, 128, 8
        $region48: #{model_structure_forward.1} parent=11 // pred_fallthru
          _
        // Predicated region
        $region49: #{model_structure_forward.1} parent=11 // pred_check
          %p397 = pneg %p257
        $region50: #{model_structure_forward.1} parent=11 // pred_check_branch
          %399 = sbr.rel (%p397) target = $region52
        $region51: #{model_structure_forward.1} parent=11 // pred_region
          _
        $region52: #{model_structure_forward.1} parent=11 // pred_fallthru
          _
        // Predicated region
        $region53: #{model_structure_forward.1} parent=11 // pred_check
          %p400 = pneg %p278
        $region54: #{model_structure_forward.1} parent=11 // pred_check_branch
          %402 = sbr.rel (%p400) target = $region56
        $region55: #{model_structure_forward.1} parent=11 // pred_region
          _
        $region56: #{model_structure_forward.1} parent=11 // pred_fallthru
          _
        // Predicated region
        $region57: #{model_structure_forward.1} parent=11 // pred_check
          %p403 = pneg %p299
        $region58: #{model_structure_forward.1} parent=11 // pred_check_branch
          %405 = sbr.rel (%p403) target = $region60
        $region59: #{model_structure_forward.1} parent=11 // pred_region
          _
        $region60: #{model_structure_forward.1} parent=11 // pred_fallthru
          _
      $region12: #{model_structure_forward.1} parent=5 // pred_fallthru
        _
      %p406 = scmp.lt.s32.totalorder %s21, 2
      // Predicated region
      $region61: #{model_structure_forward.1} parent=5 // pred_check
        %p407 = pneg %p406
      $region62: #{model_structure_forward.1} parent=5 // pred_check_branch
        %409 = sbr.rel (%p407) target = $region64
      $region63: #{model_structure_forward.1} parent=5 // pred_region
        // Predicated region
        $region65: #{model_structure_forward.1} parent=63 // pred_check
          %p410 = pneg %p41
        $region66: #{model_structure_forward.1} parent=63 // pred_check_branch
          %412 = sbr.rel (%p410) target = $region68
        $region67: #{model_structure_forward.1} parent=63 // pred_region
          %s413 = smul.u32 2, %s21
          %p414 = scmp.lt.s32.totalorder %s413, 3
          %s415 = scalar_select %p414, %s413, 3
          %s416 = smul.addr %s415, 8
          %s417 = scalar_lea.vmem %s0, %s416
          %s418 = smul.u32 2, %s21
        $region68: #{model_structure_forward.1} parent=63 // pred_fallthru
          _
      $region64: #{model_structure_forward.1} parent=5 // pred_fallthru
        _
      %p419 = scmp.le.s32.totalorder 1, %s21
      %p420 = scmp.lt.s32.totalorder %s21, 3
      %p421 = pnand %p419, %p420
      %p422 = pneg %p421
      // Predicated region
      $region69: #{model_structure_forward.1} parent=5 // pred_check
        _
      $region70: #{model_structure_forward.1} parent=5 // pred_check_branch
        %424 = sbr.rel (%p421) target = $region72
      $region71: #{model_structure_forward.1} parent=5 // pred_region
        %s425 = ssub.s32 %s21, 1
        // Predicated region
        $region73: #{model_structure_forward.1} parent=71 // pred_check
          %p426 = pneg %p152
        $region74: #{model_structure_forward.1} parent=71 // pred_check_branch
          %428 = sbr.rel (%p426) target = $region76
        $region75: #{model_structure_forward.1} parent=71 // pred_region
          %429 = dma.done [#allocation3], 2048
        $region76: #{model_structure_forward.1} parent=71 // pred_fallthru
          _
        // Predicated region
        $region77: #{model_structure_forward.1} parent=71 // pred_check
          %p430 = pneg %p194
        $region78: #{model_structure_forward.1} parent=71 // pred_check_branch
          %432 = sbr.rel (%p430) target = $region80
        $region79: #{model_structure_forward.1} parent=71 // pred_region
          %433 = dma.done [#allocation5], 2048
        $region80: #{model_structure_forward.1} parent=71 // pred_fallthru
          _
        // Predicated region
        $region81: #{model_structure_forward.1} parent=71 // pred_check
          %p434 = pneg %p236
        $region82: #{model_structure_forward.1} parent=71 // pred_check_branch
          %436 = sbr.rel (%p434) target = $region84
        $region83: #{model_structure_forward.1} parent=71 // pred_region
          %437 = dma.done [#allocation5], 2048
        $region84: #{model_structure_forward.1} parent=71 // pred_fallthru
          _
        %s438 = smul.u32 2, %s26
        %p439 = scmp.lt.s32.totalorder %s438, 3
        %s440 = scalar_select %p439, %s438, 3
        %s441 = smul.addr %s440, 8
        %s442 = scalar_lea.vmem %s0, %s441
        %p443 = pneg %p47
        %p444 = pneg %p44
        %p445 = pneg %p68
        %p446 = pneg %p65
        %p447 = pneg %p89
        %p448 = pneg %p86
        %p449 = pneg %p110
        %p450 = pneg %p107
        %p451 = pneg %p131
        %p452 = pneg %p128
        %p453 = pneg %p152
        %p454 = pneg %p149
        %p455 = pneg %p173
        %p456 = pneg %p170
        %p457 = pneg %p194
        %p458 = pneg %p191
        %p459 = pneg %p215
        %p460 = pneg %p212
        %p461 = pneg %p236
        %p462 = pneg %p233
        %p463 = pneg %p257
        %p464 = pneg %p254
        %p465 = pneg %p278
        %p466 = pneg %p275
        %p467 = pneg %p299
        %p468 = pneg %p296
        %p469 = pneg %p325
        %p470 = pneg %p322
        %s471 = smul.u32 2, %s26
        %p472 = scmp.lt.s32.totalorder %s471, 3
        %s473 = scalar_select %p472, %s471, 3
        %s474 = smul.addr %s473, 8
        %s475 = scalar_lea.vmem %s13, %s474
        %s476 = smul.u32 2, %s26
        %p477 = scmp.lt.s32.totalorder %s476, 3
        %s478 = scalar_select %p477, %s476, 3
        %s479 = smul.addr %s478, 8
        %s480 = scalar_lea.vmem %s0, %s479
        %s481 = smul.u32 2, %s26
        %s482 = smul.u32 2, %s26
        %p483 = scmp.lt.s32.totalorder %s482, 3
        %s484 = scalar_select %p483, %s482, 3
        %s485 = smul.addr %s484, 8
        %s486 = scalar_lea.vmem %s13, %s485
        %s487 = smul.u32 2, %s26
        %v488 = vld [vmem:[%s480] sm:$0xff]
        %v489 = vld [vmem:[%s480 + $0x8] sm:$0xff]
        %v490 = vld [vmem:[%s1] sm:$0xff]
        %v491 = vld [vmem:[%s1 + $0x8] sm:$0xff]
        %v492 = vld [vmem:[%s2] sm:$0x1]
        %v494 = vlaneseq
        %v495 = vshrl.u32 %v494, 7
        %v496 = vsub.s32 0, %v495
        %v497 = vrot.slane %v492, %v496
        %vm499 = vcmask 130048
        %v501 = vsel %vm499, %v488, 0
        %v504 = vsel %vm499, %v489, 0
        %506 = vmatprep.subr.mxu0 0.0
        %507 = vmatpush1.msra.mxu0 0.0
        %508 = vmatprep.subr.mxu0 0.0
        %509 = vmatpush1.msra.mxu0 0.0
        %510 = vmatprep.subr.mxu0 0.0
        %511 = vmatpush1.msra.mxu0 0.0
        %512 = vmatprep.subr.mxu0 0.0
        %513 = vmatpush1.msra.mxu0 0.0
        %514 = vmatprep.subr.mxu0 0.0
        %515 = vmatpush1.msra.mxu0 0.0
        %516 = vmatprep.subr.mxu0 0.0
        %517 = vmatpush1.msra.mxu0 0.0
        %518 = vmatprep.subr.mxu0 0.0
        %519 = vmatpush1.msra.mxu0 0.0
        %520 = vmatprep.subr.mxu0 0.0
        %521 = vmatpush1.msra.mxu0 0.0
        %522 = vmatprep.subr.mxu0 0.0
        %523 = vmatpush1.msra.mxu0 0.0
        %524 = vmatprep.subr.mxu0 0.0
        %525 = vmatpush1.msra.mxu0 0.0
        %526 = vmatprep.subr.mxu0 0.0
        %527 = vmatpush1.msra.mxu0 0.0
        %528 = vmatprep.subr.mxu0 0.0
        %529 = vmatpush1.msra.mxu0 0.0
        %530 = vmatprep.subr.mxu0 0.0
        %531 = vmatpush1.msra.mxu0 0.0
        %532 = vmatprep.subr.mxu0 0.0
        %533 = vmatpush1.msra.mxu0 0.0
        %534 = vmatprep.subr.mxu0 0.0
        %535 = vmatpush1.msra.mxu0 %v491
        %536 = vmatprep.subr.mxu0 0.0
        %537 = vmatpush1.msra.mxu0 %v490
        %538 = vmatprep.subr.mxu0 0.0
        %539 = vmatpush2.msra.mxu0 0.0
        %540 = vmatprep.subr.mxu0 0.0
        %541 = vmatpush2.msra.mxu0 0.0
        %542 = vmatprep.subr.mxu0 0.0
        %543 = vmatpush2.msra.mxu0 0.0
        %544 = vmatprep.subr.mxu0 0.0
        %545 = vmatpush2.msra.mxu0 0.0
        %546 = vmatprep.subr.mxu0 0.0
        %547 = vmatpush2.msra.mxu0 0.0
        %548 = vmatprep.subr.mxu0 0.0
        %549 = vmatpush2.msra.mxu0 0.0
        %550 = vmatprep.subr.mxu0 0.0
        %551 = vmatpush2.msra.mxu0 0.0
        %552 = vmatprep.subr.mxu0 0.0
        %553 = vmatpush2.msra.mxu0 0.0
        %554 = vmatprep.subr.mxu0 0.0
        %555 = vmatpush2.msra.mxu0 0.0
        %556 = vmatprep.subr.mxu0 0.0
        %557 = vmatpush2.msra.mxu0 0.0
        %558 = vmatprep.subr.mxu0 0.0
        %559 = vmatpush2.msra.mxu0 0.0
        %560 = vmatprep.subr.mxu0 0.0
        %561 = vmatpush2.msra.mxu0 0.0
        %562 = vmatprep.subr.mxu0 0.0
        %563 = vmatpush2.msra.mxu0 0.0
        %564 = vmatprep.subr.mxu0 0.0
        %565 = vmatpush2.msra.mxu0 0.0
        %566 = vmatprep.subr.mxu0 0.0
        %567 = vmatpush2.msra.mxu0 0.0
        %568 = vmatprep.subr.mxu0 0.0
        %569 = vmatpush2.msra.mxu0 0.0
        %570 = vmatprep.mubr.f32.mxu0 0.0
        %571 = vmatmul.mubr.f32.gmra.mxu0 %v501
        %v572 = vpop.f32.mrf.mxu0
        %v573 = vadd.f32 %v497, %v572
        %v574 = vpop.f32.mrf.mxu0
        %575 = vmatprep.mubr.f32.mxu0 0.0
        %576 = vmatmul.mubr.f32.gmra.mxu0 %v504
        %v577 = vpop.f32.mrf.mxu0
        %v578 = vadd.f32 %v497, %v577
        %v579 = vpop.f32.mrf.mxu0
        %580 = vdwg.mxu0
        %v581 = vld [vmem:[%s3] sm:$0xff]
        %v582 = vld [vmem:[%s3 + $0x8] sm:$0xff]
        %v583 = vld [vmem:[%s3 + $0x10] sm:$0xff]
        %v584 = vld [vmem:[%s3 + $0x18] sm:$0xff]
        %v585 = vld [vmem:[%s3 + $0x20] sm:$0xff]
        %v586 = vld [vmem:[%s3 + $0x28] sm:$0xff]
        %v587 = vld [vmem:[%s3 + $0x30] sm:$0xff]
        %v588 = vld [vmem:[%s3 + $0x38] sm:$0xff]
        %v589 = vld [vmem:[%s3 + $0x40] sm:$0xff]
        %v590 = vld [vmem:[%s3 + $0x48] sm:$0xff]
        %v591 = vld [vmem:[%s3 + $0x50] sm:$0xff]
        %v592 = vld [vmem:[%s3 + $0x58] sm:$0xff]
        %v593 = vld [vmem:[%s3 + $0x60] sm:$0xff]
        %v594 = vld [vmem:[%s3 + $0x68] sm:$0xff]
        %v595 = vld [vmem:[%s3 + $0x70] sm:$0xff]
        %v596 = vld [vmem:[%s3 + $0x78] sm:$0xff]
        %v597 = vld [vmem:[%s4] sm:$0x1]
        %v599 = vlaneseq
        %v600 = vshrl.u32 %v599, 7
        %v601 = vsub.s32 0, %v600
        %v602 = vrot.slane %v597, %v601
        %604 = vmatprep.subr.mxu0 0.0
        %605 = vmatpush1.msra.mxu0 %v596
        %606 = vmatprep.subr.mxu0 0.0
        %607 = vmatpush1.msra.mxu0 %v595
        %608 = vmatprep.subr.mxu0 0.0
        %609 = vmatpush1.msra.mxu0 %v594
        %610 = vmatprep.subr.mxu0 0.0
        %611 = vmatpush1.msra.mxu0 %v593
        %612 = vmatprep.subr.mxu0 0.0
        %613 = vmatpush1.msra.mxu0 %v592
        %614 = vmatprep.subr.mxu0 0.0
        %615 = vmatpush1.msra.mxu0 %v591
        %616 = vmatprep.subr.mxu0 0.0
        %617 = vmatpush1.msra.mxu0 %v590
        %618 = vmatprep.subr.mxu0 0.0
        %619 = vmatpush1.msra.mxu0 %v589
        %620 = vmatprep.subr.mxu0 0.0
        %621 = vmatpush1.msra.mxu0 %v588
        %622 = vmatprep.subr.mxu0 0.0
        %623 = vmatpush1.msra.mxu0 %v587
        %624 = vmatprep.subr.mxu0 0.0
        %625 = vmatpush1.msra.mxu0 %v586
        %626 = vmatprep.subr.mxu0 0.0
        %627 = vmatpush1.msra.mxu0 %v585
        %628 = vmatprep.subr.mxu0 0.0
        %629 = vmatpush1.msra.mxu0 %v584
        %630 = vmatprep.subr.mxu0 0.0
        %631 = vmatpush1.msra.mxu0 %v583
        %632 = vmatprep.subr.mxu0 0.0
        %633 = vmatpush1.msra.mxu0 %v582
        %634 = vmatprep.subr.mxu0 0.0
        %635 = vmatpush1.msra.mxu0 %v581
        %636 = vmatprep.subr.mxu0 0.0
        %637 = vmatpush2.msra.mxu0 0.0
        %638 = vmatprep.subr.mxu0 0.0
        %639 = vmatpush2.msra.mxu0 0.0
        %640 = vmatprep.subr.mxu0 0.0
        %641 = vmatpush2.msra.mxu0 0.0
        %642 = vmatprep.subr.mxu0 0.0
        %643 = vmatpush2.msra.mxu0 0.0
        %644 = vmatprep.subr.mxu0 0.0
        %645 = vmatpush2.msra.mxu0 0.0
        %646 = vmatprep.subr.mxu0 0.0
        %647 = vmatpush2.msra.mxu0 0.0
        %648 = vmatprep.subr.mxu0 0.0
        %649 = vmatpush2.msra.mxu0 0.0
        %650 = vmatprep.subr.mxu0 0.0
        %651 = vmatpush2.msra.mxu0 0.0
        %652 = vmatprep.subr.mxu0 0.0
        %653 = vmatpush2.msra.mxu0 0.0
        %654 = vmatprep.subr.mxu0 0.0
        %655 = vmatpush2.msra.mxu0 0.0
        %656 = vmatprep.subr.mxu0 0.0
        %657 = vmatpush2.msra.mxu0 0.0
        %658 = vmatprep.subr.mxu0 0.0
        %659 = vmatpush2.msra.mxu0 0.0
        %660 = vmatprep.subr.mxu0 0.0
        %661 = vmatpush2.msra.mxu0 0.0
        %662 = vmatprep.subr.mxu0 0.0
        %663 = vmatpush2.msra.mxu0 0.0
        %664 = vmatprep.subr.mxu0 0.0
        %665 = vmatpush2.msra.mxu0 0.0
        %666 = vmatprep.subr.mxu0 0.0
        %667 = vmatpush2.msra.mxu0 0.0
        %668 = vmatprep.mubr.f32.mxu0 0.0
        %669 = vmatmul.mubr.f32.gmra.mxu0 %v573
        %v670 = vpop.f32.mrf.mxu0
        %v671 = vadd.f32 %v602, %v670
        %v672 = vpop.f32.mrf.mxu0
        %673 = vmatprep.mubr.f32.mxu0 0.0
        %674 = vmatmul.mubr.f32.gmra.mxu0 %v578
        %v675 = vpop.f32.mrf.mxu0
        %v676 = vadd.f32 %v602, %v675
        %v677 = vpop.f32.mrf.mxu0
        %678 = vdwg.mxu0
        %v679 = vmax.f32 %v671, 0.0
        %v680 = vmax.f32 %v676, 0.0
        %v681 = vld [vmem:[#allocation2] sm:$0xff]
        %v682 = vld [vmem:[#allocation2 + $0x8] sm:$0xff]
        %v683 = vld [vmem:[#allocation2 + $0x10] sm:$0xff]
        %v684 = vld [vmem:[#allocation2 + $0x18] sm:$0xff]
        %v685 = vld [vmem:[#allocation2 + $0x20] sm:$0xff]
        %v686 = vld [vmem:[#allocation2 + $0x28] sm:$0xff]
        %v687 = vld [vmem:[#allocation2 + $0x30] sm:$0xff]
        %v688 = vld [vmem:[#allocation2 + $0x38] sm:$0xff]
        %v689 = vld [vmem:[#allocation2 + $0x40] sm:$0xff]
        %v690 = vld [vmem:[#allocation2 + $0x48] sm:$0xff]
        %v691 = vld [vmem:[#allocation2 + $0x50] sm:$0xff]
        %v692 = vld [vmem:[#allocation2 + $0x58] sm:$0xff]
        %v693 = vld [vmem:[#allocation2 + $0x60] sm:$0xff]
        %v694 = vld [vmem:[#allocation2 + $0x68] sm:$0xff]
        %v695 = vld [vmem:[#allocation2 + $0x70] sm:$0xff]
        %v696 = vld [vmem:[#allocation2 + $0x78] sm:$0xff]
        %v697 = vld [vmem:[%s6] sm:$0x1]
        %v699 = vlaneseq
        %v700 = vshrl.u32 %v699, 7
        %v701 = vsub.s32 0, %v700
        %v702 = vrot.slane %v697, %v701
        %704 = vmatprep.subr.mxu0 0.0
        %705 = vmatpush1.msra.mxu0 %v696
        %706 = vmatprep.subr.mxu0 0.0
        %707 = vmatpush1.msra.mxu0 %v695
        %708 = vmatprep.subr.mxu0 0.0
        %709 = vmatpush1.msra.mxu0 %v694
        %710 = vmatprep.subr.mxu0 0.0
        %711 = vmatpush1.msra.mxu0 %v693
        %712 = vmatprep.subr.mxu0 0.0
        %713 = vmatpush1.msra.mxu0 %v692
        %714 = vmatprep.subr.mxu0 0.0
        %715 = vmatpush1.msra.mxu0 %v691
        %716 = vmatprep.subr.mxu0 0.0
        %717 = vmatpush1.msra.mxu0 %v690
        %718 = vmatprep.subr.mxu0 0.0
        %719 = vmatpush1.msra.mxu0 %v689
        %720 = vmatprep.subr.mxu0 0.0
        %721 = vmatpush1.msra.mxu0 %v688
        %722 = vmatprep.subr.mxu0 0.0
        %723 = vmatpush1.msra.mxu0 %v687
        %724 = vmatprep.subr.mxu0 0.0
        %725 = vmatpush1.msra.mxu0 %v686
        %726 = vmatprep.subr.mxu0 0.0
        %727 = vmatpush1.msra.mxu0 %v685
        %728 = vmatprep.subr.mxu0 0.0
        %729 = vmatpush1.msra.mxu0 %v684
        %730 = vmatprep.subr.mxu0 0.0
        %731 = vmatpush1.msra.mxu0 %v683
        %732 = vmatprep.subr.mxu0 0.0
        %733 = vmatpush1.msra.mxu0 %v682
        %734 = vmatprep.subr.mxu0 0.0
        %735 = vmatpush1.msra.mxu0 %v681
        %736 = vmatprep.subr.mxu0 0.0
        %737 = vmatpush2.msra.mxu0 0.0
        %738 = vmatprep.subr.mxu0 0.0
        %739 = vmatpush2.msra.mxu0 0.0
        %740 = vmatprep.subr.mxu0 0.0
        %741 = vmatpush2.msra.mxu0 0.0
        %742 = vmatprep.subr.mxu0 0.0
        %743 = vmatpush2.msra.mxu0 0.0
        %744 = vmatprep.subr.mxu0 0.0
        %745 = vmatpush2.msra.mxu0 0.0
        %746 = vmatprep.subr.mxu0 0.0
        %747 = vmatpush2.msra.mxu0 0.0
        %748 = vmatprep.subr.mxu0 0.0
        %749 = vmatpush2.msra.mxu0 0.0
        %750 = vmatprep.subr.mxu0 0.0
        %751 = vmatpush2.msra.mxu0 0.0
        %752 = vmatprep.subr.mxu0 0.0
        %753 = vmatpush2.msra.mxu0 0.0
        %754 = vmatprep.subr.mxu0 0.0
        %755 = vmatpush2.msra.mxu0 0.0
        %756 = vmatprep.subr.mxu0 0.0
        %757 = vmatpush2.msra.mxu0 0.0
        %758 = vmatprep.subr.mxu0 0.0
        %759 = vmatpush2.msra.mxu0 0.0
        %760 = vmatprep.subr.mxu0 0.0
        %761 = vmatpush2.msra.mxu0 0.0
        %762 = vmatprep.subr.mxu0 0.0
        %763 = vmatpush2.msra.mxu0 0.0
        %764 = vmatprep.subr.mxu0 0.0
        %765 = vmatpush2.msra.mxu0 0.0
        %766 = vmatprep.subr.mxu0 0.0
        %767 = vmatpush2.msra.mxu0 0.0
        %768 = vmatprep.mubr.f32.mxu0 0.0
        %769 = vmatmul.mubr.f32.gmra.mxu0 %v679
        %v770 = vpop.f32.mrf.mxu0
        %v771 = vadd.f32 %v702, %v770
        %v772 = vpop.f32.mrf.mxu0
        %773 = vmatprep.mubr.f32.mxu0 0.0
        %774 = vmatmul.mubr.f32.gmra.mxu0 %v680
        %v775 = vpop.f32.mrf.mxu0
        %v776 = vadd.f32 %v702, %v775
        %v777 = vpop.f32.mrf.mxu0
        %778 = vdwg.mxu0
        %v779 = vmax.f32 %v771, 0.0
        %v780 = vmax.f32 %v776, 0.0
        %v781 = vld [vmem:[#allocation4] sm:$0xff]
        %v782 = vld [vmem:[#allocation4 + $0x8] sm:$0xff]
        %v783 = vld [vmem:[#allocation4 + $0x10] sm:$0xff]
        %v784 = vld [vmem:[#allocation4 + $0x18] sm:$0xff]
        %v785 = vld [vmem:[#allocation4 + $0x20] sm:$0xff]
        %v786 = vld [vmem:[#allocation4 + $0x28] sm:$0xff]
        %v787 = vld [vmem:[#allocation4 + $0x30] sm:$0xff]
        %v788 = vld [vmem:[#allocation4 + $0x38] sm:$0xff]
        %v789 = vld [vmem:[#allocation4 + $0x40] sm:$0xff]
        %v790 = vld [vmem:[#allocation4 + $0x48] sm:$0xff]
        %v791 = vld [vmem:[#allocation4 + $0x50] sm:$0xff]
        %v792 = vld [vmem:[#allocation4 + $0x58] sm:$0xff]
        %v793 = vld [vmem:[#allocation4 + $0x60] sm:$0xff]
        %v794 = vld [vmem:[#allocation4 + $0x68] sm:$0xff]
        %v795 = vld [vmem:[#allocation4 + $0x70] sm:$0xff]
        %v796 = vld [vmem:[#allocation4 + $0x78] sm:$0xff]
        %v797 = vld [vmem:[%s8] sm:$0x1]
        %v799 = vlaneseq
        %v800 = vshrl.u32 %v799, 7
        %v801 = vsub.s32 0, %v800
        %v802 = vrot.slane %v797, %v801
        %804 = vmatprep.subr.mxu0 0.0
        %805 = vmatpush1.msra.mxu0 %v796
        %806 = vmatprep.subr.mxu0 0.0
        %807 = vmatpush1.msra.mxu0 %v795
        %808 = vmatprep.subr.mxu0 0.0
        %809 = vmatpush1.msra.mxu0 %v794
        %810 = vmatprep.subr.mxu0 0.0
        %811 = vmatpush1.msra.mxu0 %v793
        %812 = vmatprep.subr.mxu0 0.0
        %813 = vmatpush1.msra.mxu0 %v792
        %814 = vmatprep.subr.mxu0 0.0
        %815 = vmatpush1.msra.mxu0 %v791
        %816 = vmatprep.subr.mxu0 0.0
        %817 = vmatpush1.msra.mxu0 %v790
        %818 = vmatprep.subr.mxu0 0.0
        %819 = vmatpush1.msra.mxu0 %v789
        %820 = vmatprep.subr.mxu0 0.0
        %821 = vmatpush1.msra.mxu0 %v788
        %822 = vmatprep.subr.mxu0 0.0
        %823 = vmatpush1.msra.mxu0 %v787
        %824 = vmatprep.subr.mxu0 0.0
        %825 = vmatpush1.msra.mxu0 %v786
        %826 = vmatprep.subr.mxu0 0.0
        %827 = vmatpush1.msra.mxu0 %v785
        %828 = vmatprep.subr.mxu0 0.0
        %829 = vmatpush1.msra.mxu0 %v784
        %830 = vmatprep.subr.mxu0 0.0
        %831 = vmatpush1.msra.mxu0 %v783
        %832 = vmatprep.subr.mxu0 0.0
        %833 = vmatpush1.msra.mxu0 %v782
        %834 = vmatprep.subr.mxu0 0.0
        %835 = vmatpush1.msra.mxu0 %v781
        %836 = vmatprep.subr.mxu0 0.0
        %837 = vmatpush2.msra.mxu0 0.0
        %838 = vmatprep.subr.mxu0 0.0
        %839 = vmatpush2.msra.mxu0 0.0
        %840 = vmatprep.subr.mxu0 0.0
        %841 = vmatpush2.msra.mxu0 0.0
        %842 = vmatprep.subr.mxu0 0.0
        %843 = vmatpush2.msra.mxu0 0.0
        %844 = vmatprep.subr.mxu0 0.0
        %845 = vmatpush2.msra.mxu0 0.0
        %846 = vmatprep.subr.mxu0 0.0
        %847 = vmatpush2.msra.mxu0 0.0
        %848 = vmatprep.subr.mxu0 0.0
        %849 = vmatpush2.msra.mxu0 0.0
        %850 = vmatprep.subr.mxu0 0.0
        %851 = vmatpush2.msra.mxu0 0.0
        %852 = vmatprep.subr.mxu0 0.0
        %853 = vmatpush2.msra.mxu0 0.0
        %854 = vmatprep.subr.mxu0 0.0
        %855 = vmatpush2.msra.mxu0 0.0
        %856 = vmatprep.subr.mxu0 0.0
        %857 = vmatpush2.msra.mxu0 0.0
        %858 = vmatprep.subr.mxu0 0.0
        %859 = vmatpush2.msra.mxu0 0.0
        %860 = vmatprep.subr.mxu0 0.0
        %861 = vmatpush2.msra.mxu0 0.0
        %862 = vmatprep.subr.mxu0 0.0
        %863 = vmatpush2.msra.mxu0 0.0
        %864 = vmatprep.subr.mxu0 0.0
        %865 = vmatpush2.msra.mxu0 0.0
        %866 = vmatprep.subr.mxu0 0.0
        %867 = vmatpush2.msra.mxu0 0.0
        %868 = vmatprep.mubr.f32.mxu0 0.0
        %869 = vmatmul.mubr.f32.gmra.mxu0 %v779
        %v870 = vpop.f32.mrf.mxu0
        %v871 = vadd.f32 %v802, %v870
        %v872 = vpop.f32.mrf.mxu0
        %873 = vmatprep.mubr.f32.mxu0 0.0
        %874 = vmatmul.mubr.f32.gmra.mxu0 %v780
        %v875 = vpop.f32.mrf.mxu0
        %v876 = vadd.f32 %v802, %v875
        %v877 = vpop.f32.mrf.mxu0
        %878 = vdwg.mxu0
        %v879 = vmax.f32 %v871, 0.0
        %v880 = vmax.f32 %v876, 0.0
        %v881 = vld [vmem:[#allocation6] sm:$0xff]
        %v882 = vld [vmem:[#allocation6 + $0x8] sm:$0xff]
        %v883 = vld [vmem:[#allocation6 + $0x10] sm:$0xff]
        %v884 = vld [vmem:[#allocation6 + $0x18] sm:$0xff]
        %v885 = vld [vmem:[#allocation6 + $0x20] sm:$0xff]
        %v886 = vld [vmem:[#allocation6 + $0x28] sm:$0xff]
        %v887 = vld [vmem:[#allocation6 + $0x30] sm:$0xff]
        %v888 = vld [vmem:[#allocation6 + $0x38] sm:$0xff]
        %v889 = vld [vmem:[#allocation6 + $0x40] sm:$0xff]
        %v890 = vld [vmem:[#allocation6 + $0x48] sm:$0xff]
        %v891 = vld [vmem:[#allocation6 + $0x50] sm:$0xff]
        %v892 = vld [vmem:[#allocation6 + $0x58] sm:$0xff]
        %v893 = vld [vmem:[#allocation6 + $0x60] sm:$0xff]
        %v894 = vld [vmem:[#allocation6 + $0x68] sm:$0xff]
        %v895 = vld [vmem:[#allocation6 + $0x70] sm:$0xff]
        %v896 = vld [vmem:[#allocation6 + $0x78] sm:$0xff]
        %v897 = vld [vmem:[%s10] sm:$0x1]
        %v899 = vlaneseq
        %v900 = vshrl.u32 %v899, 7
        %v901 = vsub.s32 0, %v900
        %v902 = vrot.slane %v897, %v901
        %904 = vmatprep.subr.mxu0 0.0
        %905 = vmatpush1.msra.mxu0 %v896
        %906 = vmatprep.subr.mxu0 0.0
        %907 = vmatpush1.msra.mxu0 %v895
        %908 = vmatprep.subr.mxu0 0.0
        %909 = vmatpush1.msra.mxu0 %v894
        %910 = vmatprep.subr.mxu0 0.0
        %911 = vmatpush1.msra.mxu0 %v893
        %912 = vmatprep.subr.mxu0 0.0
        %913 = vmatpush1.msra.mxu0 %v892
        %914 = vmatprep.subr.mxu0 0.0
        %915 = vmatpush1.msra.mxu0 %v891
        %916 = vmatprep.subr.mxu0 0.0
        %917 = vmatpush1.msra.mxu0 %v890
        %918 = vmatprep.subr.mxu0 0.0
        %919 = vmatpush1.msra.mxu0 %v889
        %920 = vmatprep.subr.mxu0 0.0
        %921 = vmatpush1.msra.mxu0 %v888
        %922 = vmatprep.subr.mxu0 0.0
        %923 = vmatpush1.msra.mxu0 %v887
        %924 = vmatprep.subr.mxu0 0.0
        %925 = vmatpush1.msra.mxu0 %v886
        %926 = vmatprep.subr.mxu0 0.0
        %927 = vmatpush1.msra.mxu0 %v885
        %928 = vmatprep.subr.mxu0 0.0
        %929 = vmatpush1.msra.mxu0 %v884
        %930 = vmatprep.subr.mxu0 0.0
        %931 = vmatpush1.msra.mxu0 %v883
        %932 = vmatprep.subr.mxu0 0.0
        %933 = vmatpush1.msra.mxu0 %v882
        %934 = vmatprep.subr.mxu0 0.0
        %935 = vmatpush1.msra.mxu0 %v881
        %936 = vmatprep.subr.mxu0 0.0
        %937 = vmatpush2.msra.mxu0 0.0
        %938 = vmatprep.subr.mxu0 0.0
        %939 = vmatpush2.msra.mxu0 0.0
        %940 = vmatprep.subr.mxu0 0.0
        %941 = vmatpush2.msra.mxu0 0.0
        %942 = vmatprep.subr.mxu0 0.0
        %943 = vmatpush2.msra.mxu0 0.0
        %944 = vmatprep.subr.mxu0 0.0
        %945 = vmatpush2.msra.mxu0 0.0
        %946 = vmatprep.subr.mxu0 0.0
        %947 = vmatpush2.msra.mxu0 0.0
        %948 = vmatprep.subr.mxu0 0.0
        %949 = vmatpush2.msra.mxu0 0.0
        %950 = vmatprep.subr.mxu0 0.0
        %951 = vmatpush2.msra.mxu0 0.0
        %952 = vmatprep.subr.mxu0 0.0
        %953 = vmatpush2.msra.mxu0 0.0
        %954 = vmatprep.subr.mxu0 0.0
        %955 = vmatpush2.msra.mxu0 0.0
        %956 = vmatprep.subr.mxu0 0.0
        %957 = vmatpush2.msra.mxu0 0.0
        %958 = vmatprep.subr.mxu0 0.0
        %959 = vmatpush2.msra.mxu0 0.0
        %960 = vmatprep.subr.mxu0 0.0
        %961 = vmatpush2.msra.mxu0 0.0
        %962 = vmatprep.subr.mxu0 0.0
        %963 = vmatpush2.msra.mxu0 0.0
        %964 = vmatprep.subr.mxu0 0.0
        %965 = vmatpush2.msra.mxu0 0.0
        %966 = vmatprep.subr.mxu0 0.0
        %967 = vmatpush2.msra.mxu0 0.0
        %968 = vmatprep.mubr.f32.mxu0 0.0
        %969 = vmatmul.mubr.f32.gmra.mxu0 %v879
        %v970 = vpop.f32.mrf.mxu0
        %v971 = vadd.f32 %v902, %v970
        %v972 = vpop.f32.mrf.mxu0
        %973 = vmatprep.mubr.f32.mxu0 0.0
        %974 = vmatmul.mubr.f32.gmra.mxu0 %v880
        %v975 = vpop.f32.mrf.mxu0
        %v976 = vadd.f32 %v902, %v975
        %v977 = vpop.f32.mrf.mxu0
        %978 = vdwg.mxu0
        %v979 = vmax.f32 %v971, 0.0
        %v980 = vmax.f32 %v976, 0.0
        %v981 = vld [vmem:[%s11] sm:$0xff]
        %v982 = vld [vmem:[%s11 + $0x8] sm:$0xff]
        %v983 = vld [vmem:[%s11 + $0x10] sm:$0xff]
        %v984 = vld [vmem:[%s11 + $0x18] sm:$0xff]
        %v985 = vld [vmem:[%s11 + $0x20] sm:$0xff]
        %v986 = vld [vmem:[%s11 + $0x28] sm:$0xff]
        %v987 = vld [vmem:[%s11 + $0x30] sm:$0xff]
        %v988 = vld [vmem:[%s11 + $0x38] sm:$0xff]
        %v989 = vld [vmem:[%s11 + $0x40] sm:$0xff]
        %v990 = vld [vmem:[%s11 + $0x48] sm:$0xff]
        %v991 = vld [vmem:[%s11 + $0x50] sm:$0xff]
        %v992 = vld [vmem:[%s11 + $0x58] sm:$0xff]
        %v993 = vld [vmem:[%s11 + $0x60] sm:$0xff]
        %v994 = vld [vmem:[%s11 + $0x68] sm:$0xff]
        %v995 = vld [vmem:[%s11 + $0x70] sm:$0xff]
        %v996 = vld [vmem:[%s11 + $0x78] sm:$0xff]
        %v997 = vld [vmem:[%s12] sm:$0x1]
        %v999 = vlaneseq
        %v1000 = vshrl.u32 %v999, 7
        %v1001 = vsub.s32 0, %v1000
        %v1002 = vrot.slane %v997, %v1001
        %1004 = vmatprep.subr.mxu0 0.0
        %1005 = vmatpush1.msra.mxu0 %v996
        %1006 = vmatprep.subr.mxu0 0.0
        %1007 = vmatpush1.msra.mxu0 %v995
        %1008 = vmatprep.subr.mxu0 0.0
        %1009 = vmatpush1.msra.mxu0 %v994
        %1010 = vmatprep.subr.mxu0 0.0
        %1011 = vmatpush1.msra.mxu0 %v993
        %1012 = vmatprep.subr.mxu0 0.0
        %1013 = vmatpush1.msra.mxu0 %v992
        %1014 = vmatprep.subr.mxu0 0.0
        %1015 = vmatpush1.msra.mxu0 %v991
        %1016 = vmatprep.subr.mxu0 0.0
        %1017 = vmatpush1.msra.mxu0 %v990
        %1018 = vmatprep.subr.mxu0 0.0
        %1019 = vmatpush1.msra.mxu0 %v989
        %1020 = vmatprep.subr.mxu0 0.0
        %1021 = vmatpush1.msra.mxu0 %v988
        %1022 = vmatprep.subr.mxu0 0.0
        %1023 = vmatpush1.msra.mxu0 %v987
        %1024 = vmatprep.subr.mxu0 0.0
        %1025 = vmatpush1.msra.mxu0 %v986
        %1026 = vmatprep.subr.mxu0 0.0
        %1027 = vmatpush1.msra.mxu0 %v985
        %1028 = vmatprep.subr.mxu0 0.0
        %1029 = vmatpush1.msra.mxu0 %v984
        %1030 = vmatprep.subr.mxu0 0.0
        %1031 = vmatpush1.msra.mxu0 %v983
        %1032 = vmatprep.subr.mxu0 0.0
        %1033 = vmatpush1.msra.mxu0 %v982
        %1034 = vmatprep.subr.mxu0 0.0
        %1035 = vmatpush1.msra.mxu0 %v981
        %1036 = vmatprep.subr.mxu0 0.0
        %1037 = vmatpush2.msra.mxu0 0.0
        %1038 = vmatprep.subr.mxu0 0.0
        %1039 = vmatpush2.msra.mxu0 0.0
        %1040 = vmatprep.subr.mxu0 0.0
        %1041 = vmatpush2.msra.mxu0 0.0
        %1042 = vmatprep.subr.mxu0 0.0
        %1043 = vmatpush2.msra.mxu0 0.0
        %1044 = vmatprep.subr.mxu0 0.0
        %1045 = vmatpush2.msra.mxu0 0.0
        %1046 = vmatprep.subr.mxu0 0.0
        %1047 = vmatpush2.msra.mxu0 0.0
        %1048 = vmatprep.subr.mxu0 0.0
        %1049 = vmatpush2.msra.mxu0 0.0
        %1050 = vmatprep.subr.mxu0 0.0
        %1051 = vmatpush2.msra.mxu0 0.0
        %1052 = vmatprep.subr.mxu0 0.0
        %1053 = vmatpush2.msra.mxu0 0.0
        %1054 = vmatprep.subr.mxu0 0.0
        %1055 = vmatpush2.msra.mxu0 0.0
        %1056 = vmatprep.subr.mxu0 0.0
        %1057 = vmatpush2.msra.mxu0 0.0
        %1058 = vmatprep.subr.mxu0 0.0
        %1059 = vmatpush2.msra.mxu0 0.0
        %1060 = vmatprep.subr.mxu0 0.0
        %1061 = vmatpush2.msra.mxu0 0.0
        %1062 = vmatprep.subr.mxu0 0.0
        %1063 = vmatpush2.msra.mxu0 0.0
        %1064 = vmatprep.subr.mxu0 0.0
        %1065 = vmatpush2.msra.mxu0 0.0
        %1066 = vmatprep.subr.mxu0 0.0
        %1067 = vmatpush2.msra.mxu0 0.0
        %1068 = vmatprep.mubr.f32.mxu0 0.0
        %1069 = vmatmul.mubr.f32.gmra.mxu0 %v979
        %v1070 = vpop.f32.mrf.mxu0
        %v1071 = vadd.f32 %v1002, %v1070
        %v1072 = vpop.f32.mrf.mxu0
        %1073 = vmatprep.mubr.f32.mxu0 0.0
        %1074 = vmatmul.mubr.f32.gmra.mxu0 %v980
        %v1075 = vpop.f32.mrf.mxu0
        %v1076 = vadd.f32 %v1002, %v1075
        %v1077 = vpop.f32.mrf.mxu0
        %1078 = vdwg.mxu0
        %vm1079 = vcmask 23552
        %1080 = vst.msk [vmem:[%s486] sm:$0xff] %vm1079, %v1071
        %1081 = vst.msk [vmem:[%s486 + $0x8] sm:$0xff] %vm1079, %v1076
        %s1082 = smul.u32 2, %s26
        %p1083 = scmp.lt.s32.totalorder %s1082, 3
        %s1084 = scalar_select %p1083, %s1082, 3
        %s1085 = smul.addr %s1084, 8
        %s1086 = scalar_lea.vmem %s13, %s1085
        // Predicated region
        $region85: #{model_structure_forward.1} parent=71 // pred_check
          %p1087 = pneg %p322
        $region86: #{model_structure_forward.1} parent=71 // pred_check_branch
          %1089 = sbr.rel (%p1087) target = $region88
        $region87: #{model_structure_forward.1} parent=71 // pred_region
          %s1090 = smul.u32 2, %s26
        $region88: #{model_structure_forward.1} parent=71 // pred_fallthru
          _
      $region72: #{model_structure_forward.1} parent=5 // pred_fallthru
        _
      %p1091 = scmp.le.s32.totalorder 2, %s21
      // Predicated region
      $region89: #{model_structure_forward.1} parent=5 // pred_check
        %p1092 = pneg %p1091
      $region90: #{model_structure_forward.1} parent=5 // pred_check_branch
        %1094 = sbr.rel (%p1092) target = $region92
      $region91: #{model_structure_forward.1} parent=5 // pred_region
        %s1095 = ssub.s32 %s21, 2
        // Predicated region
        $region93: #{model_structure_forward.1} parent=91 // pred_check
          %p1096 = pneg %p328
        $region94: #{model_structure_forward.1} parent=91 // pred_check_branch
          %1098 = sbr.rel (%p1096) target = $region96
        $region95: #{model_structure_forward.1} parent=91 // pred_region
          %s1099 = smul.u32 2, %s27
          %p1100 = scmp.lt.s32.totalorder %s1099, 3
          %s1101 = scalar_select %p1100, %s1099, 3
          %s1102 = smul.addr %s1101, 8
          %s1103 = scalar_lea.vmem %s13, %s1102
        $region96: #{model_structure_forward.1} parent=91 // pred_fallthru
          _
      $region92: #{model_structure_forward.1} parent=5 // pred_fallthru
        _
    $region6: #{model_structure_forward.1} parent=1 // loop_footer
      %s25 = sadd.s32 1, %s21
    $region7: #{model_structure_forward.1} parent=1 // loop_footer_branch
      %20 = sbr.rel target = $region3
    $region8: #{model_structure_forward.1} parent=1 // loop_exit
      _
    %1104 = vsyncpa [#allocation3], 1
    %s1105 = scalar_lea.sflag [#allocation3], 1
    %1106 = vsyncpa %s1105, 1
    %1107 = vsyncpa [#allocation5], 1

</llo_original>
